<compile_context>
chip_gen: v5e
topology: v5e:2x2
jax: 0.10.0
libtpu: 0.0.40
codegen_flags: <defaults>
</compile_context>

<pallas_src>
import jax
import jax.numpy as jnp
from jax.experimental import pallas as pl
from jax.experimental.pallas import tpu as pltpu


def linear_kernel(x_ref, w_ref, b_ref, o_ref):
    # x_ref: VMEM (bn, in_f)       activations tile
    # w_ref: SMEM (out_f, in_f)    PyTorch-layout weights (scalars)
    # b_ref: SMEM (out_f,)         bias (scalars)
    # o_ref: VMEM (bn, out_f)
    x = x_ref[...]
    _, in_f = x.shape
    out_f = o_ref.shape[-1]

    # Lane-index row used to place per-output-column scalars onto lanes.
    lane = jax.lax.broadcasted_iota(jnp.int32, (1, out_f), 1)

    def row_from_scalars(vals):
        # Build a (1, out_f) row whose lane j holds vals[j] (pure VPU selects).
        r = jnp.full((1, out_f), vals[0], dtype=x.dtype)
        for j in range(1, out_f):
            r = jnp.where(lane == j, jnp.asarray(vals[j], x.dtype), r)
        return r

    # y = b + sum_k x[:, k] * W^T[k, :]     (VPU: selects + vmul + vadd)
    y = row_from_scalars([b_ref[j] for j in range(out_f)])               # (1, out_f)
    for k in range(in_f):
        wt_row_k = row_from_scalars([w_ref[j, k] for j in range(out_f)])  # W^T row k
        y = y + x[:, k:k + 1] * wt_row_k                                  # (bn, out_f)

    o_ref[...] = y.astype(o_ref.dtype)


def linear_pallas(x, weight, bias, *, block_rows=512):
    """y = x @ weight.T + bias, matching torch.nn.Linear(2, 2) semantics.

    Accepts any leading batch dims (flattened to rows), like nn.Linear.
    """
    out_f, in_f_w = weight.shape
    in_f = x.shape[-1]
    assert in_f_w == in_f and bias.shape == (out_f,)

    lead_shape = x.shape[:-1]
    x2 = x.reshape(-1, in_f)
    n = x2.shape[0]

    # Tiny N: single full-array block. Large N: 512-row blocks, parallel grid.
    bn = n if n <= block_rows else block_rows
    grid = (pl.cdiv(n, bn),)

    y = pl.pallas_call(
        linear_kernel,
        out_shape=jax.ShapeDtypeStruct((n, out_f), x.dtype),
        grid=grid,
        in_specs=[
            pl.BlockSpec((bn, in_f), lambda i: (i, 0)),                 # x tile (VMEM)
            pl.BlockSpec(memory_space=pltpu.MemorySpace.SMEM),          # weight (SMEM)
            pl.BlockSpec(memory_space=pltpu.MemorySpace.SMEM),          # bias   (SMEM)
        ],
        out_specs=pl.BlockSpec((bn, out_f), lambda i: (i, 0)),
        compiler_params=pltpu.CompilerParams(
            dimension_semantics=("parallel",)),
    )(x2, weight, bias)

    return y.reshape(lead_shape + (out_f,))


if __name__ == "__main__":
    key = jax.random.PRNGKey(0)
    kx, kw, kb = jax.random.split(key, 3)

    # nn.Linear(2, 2): weight [out_f=2, in_f=2], bias [2],
    # PyTorch default init U(-1/sqrt(in_f), 1/sqrt(in_f)).
    in_f, out_f = 2, 2
    bound = 1.0 / jnp.sqrt(jnp.float32(in_f))
    weight = jax.random.uniform(kw, (out_f, in_f), jnp.float32, -bound, bound)
    bias = jax.random.uniform(kb, (out_f,), jnp.float32, -bound, bound)

    # Small input batch with the required last dim of 2.
    x = jax.random.normal(kx, (8, in_f), jnp.float32)

    y = linear_pallas(x, weight, bias)
    jax.block_until_ready(y)

    # Reference check against plain JAX (same math as torch.nn.Linear).
    y_ref = x @ weight.T + bias
    assert jnp.allclose(y, y_ref, atol=1e-5, rtol=1e-5), "mismatch vs reference"

    print("KERNEL_OK")
</pallas_src>

<mosaic_0001>
module attributes {stable_mosaic.version = 11 : i64} {
  func.func @linear_kernel(%arg0: i32, %arg1: memref<8x2xf32, #tpu.memory_space<vmem>>, %arg2: memref<2x2xf32, #tpu.memory_space<smem>>, %arg3: memref<2xf32, #tpu.memory_space<smem>>, %arg4: memref<8x2xf32, #tpu.memory_space<vmem>>) attributes {dimension_semantics = [#tpu.dimension_semantics<parallel>], iteration_bounds = array<i64: 1>, scalar_prefetch = 0 : i64, scratch_operands = 0 : i64, tpu.core_type = #tpu.core_type<tc>, window_params = [{transform_indices = @transform_0, window_bounds = array<i64: 8, 2>}, {transform_indices = @transform_1, window_bounds = array<i64: 2, 2>}, {transform_indices = @transform_2, window_bounds = array<i64: 2>}, {transform_indices = @transform_3, window_bounds = array<i64: 8, 2>}]} {
    %c0 = arith.constant 0 : index
    %c0_0 = arith.constant 0 : index
    %0 = vector.load %arg1[%c0, %c0_0] : memref<8x2xf32, #tpu.memory_space<vmem>>, vector<8x2xf32>
    %1 = tpu.iota {dimensions = array<i32: 1>} : vector<1x2xi32>
    %c0_1 = arith.constant 0 : index
    %2 = memref.load %arg3[%c0_1] : memref<2xf32, #tpu.memory_space<smem>>
    %c1 = arith.constant 1 : index
    %3 = memref.load %arg3[%c1] : memref<2xf32, #tpu.memory_space<smem>>
    %4 = vector.broadcast %2 : f32 to vector<1x2xf32>
    %c1_i32 = arith.constant 1 : i32
    %5 = vector.broadcast %c1_i32 : i32 to vector<1x2xi32>
    %6 = arith.cmpi eq, %1, %5 : vector<1x2xi32>
    %7 = vector.broadcast %3 : f32 to vector<1x2xf32>
    %8 = arith.select %6, %7, %4 : vector<1x2xi1>, vector<1x2xf32>
    %c0_2 = arith.constant 0 : index
    %c0_3 = arith.constant 0 : index
    %9 = memref.load %arg2[%c0_2, %c0_3] : memref<2x2xf32, #tpu.memory_space<smem>>
    %c1_4 = arith.constant 1 : index
    %c0_5 = arith.constant 0 : index
    %10 = memref.load %arg2[%c1_4, %c0_5] : memref<2x2xf32, #tpu.memory_space<smem>>
    %11 = vector.broadcast %9 : f32 to vector<1x2xf32>
    %c1_i32_6 = arith.constant 1 : i32
    %12 = vector.broadcast %c1_i32_6 : i32 to vector<1x2xi32>
    %13 = arith.cmpi eq, %1, %12 : vector<1x2xi32>
    %14 = vector.broadcast %10 : f32 to vector<1x2xf32>
    %15 = arith.select %13, %14, %11 : vector<1x2xi1>, vector<1x2xf32>
    %16 = vector.extract_strided_slice %0 {offsets = [0, 0], sizes = [8, 1], strides = [1, 1]} : vector<8x2xf32> to vector<8x1xf32>
    %17 = vector.broadcast %16 : vector<8x1xf32> to vector<8x2xf32>
    %18 = vector.broadcast %15 : vector<1x2xf32> to vector<8x2xf32>
    %19 = arith.mulf %17, %18 : vector<8x2xf32>
    %20 = vector.broadcast %8 : vector<1x2xf32> to vector<8x2xf32>
    %21 = arith.addf %20, %19 : vector<8x2xf32>
    %c0_7 = arith.constant 0 : index
    %c1_8 = arith.constant 1 : index
    %22 = memref.load %arg2[%c0_7, %c1_8] : memref<2x2xf32, #tpu.memory_space<smem>>
    %c1_9 = arith.constant 1 : index
    %c1_10 = arith.constant 1 : index
    %23 = memref.load %arg2[%c1_9, %c1_10] : memref<2x2xf32, #tpu.memory_space<smem>>
    %24 = vector.broadcast %22 : f32 to vector<1x2xf32>
    %c1_i32_11 = arith.constant 1 : i32
    %25 = vector.broadcast %c1_i32_11 : i32 to vector<1x2xi32>
    %26 = arith.cmpi eq, %1, %25 : vector<1x2xi32>
    %27 = vector.broadcast %23 : f32 to vector<1x2xf32>
    %28 = arith.select %26, %27, %24 : vector<1x2xi1>, vector<1x2xf32>
    %29 = vector.extract_strided_slice %0 {offsets = [0, 1], sizes = [8, 1], strides = [1, 1]} : vector<8x2xf32> to vector<8x1xf32>
    %30 = vector.broadcast %29 : vector<8x1xf32> to vector<8x2xf32>
    %31 = vector.broadcast %28 : vector<1x2xf32> to vector<8x2xf32>
    %32 = arith.mulf %30, %31 : vector<8x2xf32>
    %33 = arith.addf %21, %32 : vector<8x2xf32>
    %c0_12 = arith.constant 0 : index
    %c0_13 = arith.constant 0 : index
    %34 = vector.load %arg4[%c0_12, %c0_13] : memref<8x2xf32, #tpu.memory_space<vmem>>, vector<8x2xf32>
    tpu.vector_store %arg4[%c0_12, %c0_13], %33 {strides = array<i32>} : memref<8x2xf32, #tpu.memory_space<vmem>>, vector<8x2xf32>,
    return
  }
  func.func @transform_0(%arg0: i32) -> (i32, i32) {
    %c0_i32 = arith.constant 0 : i32
    %c0_i32_0 = arith.constant 0 : i32
    return %arg0, %c0_i32 : i32, i32
  }
  func.func @transform_1(%arg0: i32) -> (i32, i32) {
    %c0_i32 = arith.constant 0 : i32
    %c0_i32_0 = arith.constant 0 : i32
    %c0_i32_1 = arith.constant 0 : i32
    return %c0_i32, %c0_i32_0 : i32, i32
  }
  func.func @transform_2(%arg0: i32) -> i32 {
    %c0_i32 = arith.constant 0 : i32
    %c0_i32_0 = arith.constant 0 : i32
    return %c0_i32 : i32
  }
  func.func @transform_3(%arg0: i32) -> (i32, i32) {
    %c0_i32 = arith.constant 0 : i32
    %c0_i32_0 = arith.constant 0 : i32
    return %arg0, %c0_i32 : i32, i32
  }
}

</mosaic_0001>

<llo_original>
// kernel: tpu_custom_call.1
$region0: #{tpu_custom_call.1}
  #allocation0 [shape = 'u32[]', space=smem, size = 0x4, offset = 0x4, fixed_abs, tag = 'smem constant byte address 0x4 - core index']
  #allocation1 [shape = 'u32[72,128]{1,0:T(1,128)}', space=vmem, size = 0x9000, scoped, tag = 'internal scratch']
  %s0 = inlined_call_operand.vmem [shape: f32[8,2], index: 0, kind: input, shape index: {}]
  %s1 = inlined_call_operand.vmem [shape: f32[2,2], index: 1, kind: input, shape index: {}]
  %s2 = inlined_call_operand.vmem [shape: f32[2], index: 2, kind: input, shape index: {}]
  %s3 = inlined_call_operand.vmem [shape: f32[8,2], index: 3, kind: output, shape index: {}]
  %s4 = sld [smem:[#allocation0]]
  $region30: #{tpu_custom_call.1} parent=0
    _
  %s6 = ssub.s32 1, %s4
  %s7 = scalar_select 0, %s6, %s4
  $region1: #{tpu_custom_call.1} parent=0
    #allocation2 [shape = 'u8[1024]{0}', space=smem, size = 0x400, scoped, tag = 'input window, operand 1, single buffered']
    #allocation3 [shape = 's32[1]{0}', space=sflag, size = 0x4, scoped, tag = 'scoped memory for tpu_custom_call.1']
    #allocation4 [shape = 'u8[512]{0}', space=smem, size = 0x200, scoped, tag = 'input window, operand 2, single buffered']
    #allocation5 [shape = 's32[1]{0}', space=sflag, size = 0x4, scoped, tag = 'scoped memory for tpu_custom_call.1']
    %8 = vsyncpa [#allocation3], 0
    %9 = vsyncpa [#allocation5], 0
    // Predicated region
    $region2: #{tpu_custom_call.1} parent=1 // pred_check
      _
    $region3: #{tpu_custom_call.1} parent=1 // pred_check_branch
      %11 = sbr.rel (0) target = $region5
    $region4: #{tpu_custom_call.1} parent=1 // pred_region
      _
    $region5: #{tpu_custom_call.1} parent=1 // pred_fallthru
      _
    // Predicated region
    $region6: #{tpu_custom_call.1} parent=1 // pred_check
      _
    $region7: #{tpu_custom_call.1} parent=1 // pred_check_branch
      %13 = sbr.rel (0) target = $region9
    $region8: #{tpu_custom_call.1} parent=1 // pred_region
      %15 = vsyncadd [#allocation3], 0
      %s17 = sshll.u32 %s1, 4
      %s18 = int_to_ptr.vmem [resolvable:$true] %s17
      %20 = dma.vmem_to_smem %s18, 32, [#allocation2], [#allocation3]
    $region9: #{tpu_custom_call.1} parent=1 // pred_fallthru
      _
    // Predicated region
    $region10: #{tpu_custom_call.1} parent=1 // pred_check
      _
    $region11: #{tpu_custom_call.1} parent=1 // pred_check_branch
      %22 = sbr.rel (0) target = $region13
    $region12: #{tpu_custom_call.1} parent=1 // pred_region
      %24 = vsyncadd [#allocation5], 0
      %s26 = sshll.u32 %s2, 4
      %s27 = int_to_ptr.vmem [resolvable:$true] %s26
      %29 = dma.vmem_to_smem %s27, 16, [#allocation4], [#allocation5]
    $region13: #{tpu_custom_call.1} parent=1 // pred_fallthru
      _
    // Predicated region
    $region14: #{tpu_custom_call.1} parent=1 // pred_check
      _
    $region15: #{tpu_custom_call.1} parent=1 // pred_check_branch
      %31 = sbr.rel (0) target = $region17
    $region16: #{tpu_custom_call.1} parent=1 // pred_region
      %33 = dma.done [#allocation3], 32
    $region17: #{tpu_custom_call.1} parent=1 // pred_fallthru
      _
    // Predicated region
    $region18: #{tpu_custom_call.1} parent=1 // pred_check
      _
    $region19: #{tpu_custom_call.1} parent=1 // pred_check_branch
      %35 = sbr.rel (0) target = $region21
    $region20: #{tpu_custom_call.1} parent=1 // pred_region
      %37 = dma.done [#allocation5], 16
    $region21: #{tpu_custom_call.1} parent=1 // pred_fallthru
      _
    %38 = sfence
    %v39 = vld [vmem:[%s0] sm:$0xff]
    %v40 = vlaneseq
    %v41 = vand.u32 %v40, 127
    %s42 = sld [smem:[#allocation4]]
    %s43 = sld [smem:[#allocation4 + $0x1]]
    %v44 = vstv %s42
    %vm45 = vcmp.eq.s32.totalorder %v41, 1
    %v46 = vstv %s43
    %v47 = vsel %vm45, %v46, %v44
    %s48 = sld [smem:[#allocation2]]
    %s49 = sld [smem:[#allocation2 + $0x80]]
    %v50 = vstv %s48
    %v51 = vstv %s49
    %v52 = vsel %vm45, %v51, %v50
    %54 = vset.pattern.permute.xlu0 0
    %55 = vperm.xlu0 %54, %v39
    %v56 = vpop.permute.xlu0 %55
    %v58 = vmul.f32 %v56, %v52
    %v59 = vadd.f32 %v47, %v58
    %s60 = sld [smem:[#allocation2 + $0x1]]
    %s61 = sld [smem:[#allocation2 + $0x81]]
    %v62 = vstv %s60
    %v63 = vstv %s61
    %v64 = vsel %vm45, %v63, %v62
    %65 = vset.pattern.permute.xlu0 1
    %66 = vperm.xlu0 %65, %v39
    %v67 = vpop.permute.xlu0 %66
    %v69 = vmul.f32 %v67, %v64
    %v70 = vadd.f32 %v59, %v69
    %vm71 = vcmask 15360
    %72 = vst.msk [vmem:[%s3] sm:$0xff] %vm71, %v70
    // Predicated region
    $region22: #{tpu_custom_call.1} parent=1 // pred_check
      _
    $region23: #{tpu_custom_call.1} parent=1 // pred_check_branch
      %74 = sbr.rel (0) target = $region25
    $region24: #{tpu_custom_call.1} parent=1 // pred_region
      _
    $region25: #{tpu_custom_call.1} parent=1 // pred_fallthru
      _
    // Predicated region
    $region26: #{tpu_custom_call.1} parent=1 // pred_check
      _
    $region27: #{tpu_custom_call.1} parent=1 // pred_check_branch
      %76 = sbr.rel (0) target = $region29
    $region28: #{tpu_custom_call.1} parent=1 // pred_region
      _
    $region29: #{tpu_custom_call.1} parent=1 // pred_fallthru
      _
    %77 = vsyncpa [#allocation3], 1
    %78 = vsyncpa [#allocation5], 1

</llo_original>
